<compile_context>
chip_gen: v6e
topology: v6e:2x2x1
jax: 0.10.0
libtpu: 0.0.40
codegen_flags: <defaults>
</compile_context>

<pallas_src>
import functools

import jax
import jax.numpy as jnp
from jax.experimental import pallas as pl
from jax.experimental.pallas import tpu as pltpu


def _round_up(x: int, m: int) -> int:
    return pl.cdiv(x, m) * m


def _atom_encoder_kernel(x_ref, tables_ref, out_ref, *, num_features, total_vocab):
    # x_ref:      (TILE_N, F)     int32   (VMEM) -- already offset by feature*V
    # tables_ref: (F*V, H)        float32 (VMEM, fully resident)
    # out_ref:    (TILE_N, H)     float32 (VMEM)
    tile_n = x_ref.shape[0]
    idx = x_ref[...]  # (TILE_N, F)

    col = jax.lax.broadcasted_iota(jnp.int32, (tile_n, total_vocab), 1)

    # Fused one-hot over all features: feature i's indices live in
    # [i*V, (i+1)*V), so the per-feature one-hots are disjoint and their sum
    # is still a 0/1 matrix with exactly F ones per row.
    onehot = (idx[:, 0:1] == col).astype(jnp.float32)
    for i in range(1, num_features):  # static, unrolled (F is tiny)
        onehot = onehot + (idx[:, i : i + 1] == col).astype(jnp.float32)

    # Single MXU matmul with K = F*V (e.g. 256) -> fills the contraction dim.
    out_ref[...] = jnp.dot(
        onehot, tables_ref[...], preferred_element_type=jnp.float32
    )


def atom_encoder(x, tables, *, tile_n: int = 1024):
    """AtomEncoder forward.

    x:      int   [N] or [N, F]   (feature indices)
    tables: float [F, V, H]       (stacked embedding tables)
    returns float32 [N, H] = sum_i tables[i][x[:, i]]
    """
    if x.ndim == 1:
        x = x[:, None]
    n, f = x.shape
    fe, v, h = tables.shape
    assert f == fe, "number of index columns must match number of tables"

    # Reshape tables to a single (F*V, H) matrix; offset indices per feature.
    tables2d = tables.astype(jnp.float32).reshape(fe * v, h)
    offsets = (jnp.arange(f, dtype=jnp.int32) * v)[None, :]
    x_off = x.astype(jnp.int32) + offsets  # (N, F)

    # Pick a tile that is a multiple of 8 sublanes and no larger than needed;
    # pad N up to a multiple of the tile (padded rows are sliced off after).
    tile = max(8, min(_round_up(tile_n, 8), _round_up(n, 8)))
    n_pad = _round_up(n, tile)
    if n_pad != n:
        x_off = jnp.pad(x_off, ((0, n_pad - n), (0, 0)))  # index 0 is valid/cheap

    total_vocab = fe * v
    kernel = functools.partial(
        _atom_encoder_kernel, num_features=f, total_vocab=total_vocab
    )

    cost = pl.CostEstimate(
        flops=2 * n_pad * total_vocab * h,
        transcendentals=0,
        bytes_accessed=4 * n_pad * f + 4 * n_pad * h + 4 * total_vocab * h,
    )

    out = pl.pallas_call(
        kernel,
        out_shape=jax.ShapeDtypeStruct((n_pad, h), jnp.float32),
        grid_spec=pltpu.PrefetchScalarGridSpec(
            num_scalar_prefetch=0,
            grid=(n_pad // tile,),
            in_specs=[
                pl.BlockSpec((tile, f), lambda i: (i, 0)),          # index rows
                pl.BlockSpec((total_vocab, h), lambda i: (0, 0)),   # table resident
            ],
            out_specs=pl.BlockSpec((tile, h), lambda i: (i, 0)),
        ),
        compiler_params=pltpu.CompilerParams(
            dimension_semantics=("parallel",),  # shards the N axis across TCs (v7x)
        ),
        cost_estimate=cost,
    )(x_off, tables2d)

    return out[:n]


def _reference(x, tables):
    if x.ndim == 1:
        x = x[:, None]
    f = x.shape[1]
    ref = jnp.zeros((x.shape[0], tables.shape[-1]), jnp.float32)
    for i in range(f):
        ref = ref + tables[i][x[:, i]]
    return ref


if __name__ == "__main__":
    # Module config: hidden_channels=128, embedding_dimensions defaults to [64]*4.
    HIDDEN = 128
    VOCAB = 64
    NUM_FEATURES = 4

    key = jax.random.PRNGKey(0)
    k_tab, k_idx1, k_idx2 = jax.random.split(key, 3)

    # Deterministic parameter init: nn.Embedding default is N(0, 1).
    tables = jax.random.normal(
        k_tab, (NUM_FEATURES, VOCAB, HIDDEN), dtype=jnp.float32
    )

    # Test 1: small, tile-aligned N (single grid step).
    x1 = jax.random.randint(k_idx1, (16, NUM_FEATURES), 0, VOCAB, dtype=jnp.int32)
    out1 = jax.block_until_ready(atom_encoder(x1, tables))
    ref1 = _reference(x1, tables)
    assert out1.shape == ref1.shape
    assert jnp.allclose(out1, ref1, atol=1e-5, rtol=1e-5), "mismatch (test 1)"

    # Test 2: N not a multiple of 8, small tile_n -> exercises padding + multi-step grid.
    x2 = jax.random.randint(k_idx2, (20, NUM_FEATURES), 0, VOCAB, dtype=jnp.int32)
    out2 = jax.block_until_ready(atom_encoder(x2, tables, tile_n=8))
    ref2 = _reference(x2, tables)
    assert out2.shape == ref2.shape
    assert jnp.allclose(out2, ref2, atol=1e-5, rtol=1e-5), "mismatch (test 2)"

    print("KERNEL_OK")
</pallas_src>

<mosaic_0001>
module attributes {stable_mosaic.version = 11 : i64} {
  func.func @_atom_encoder_kernel(%arg0: i32, %arg1: memref<16x4xi32, #tpu.memory_space<vmem>>, %arg2: memref<256x128xf32, #tpu.memory_space<vmem>>, %arg3: memref<16x128xf32, #tpu.memory_space<vmem>>) attributes {dimension_semantics = [#tpu.dimension_semantics<parallel>], iteration_bounds = array<i64: 1>, scalar_prefetch = 0 : i64, scratch_operands = 0 : i64, tpu.core_type = #tpu.core_type<tc>, window_params = [{transform_indices = @transform_0, window_bounds = array<i64: 16, 4>}, {pipeline_mode = #tpu.pipeline_mode<synchronous>, transform_indices = @transform_1, window_bounds = array<i64: 256, 128>}, {transform_indices = @transform_2, window_bounds = array<i64: 16, 128>}]} {
    %c0 = arith.constant 0 : index
    %c0_0 = arith.constant 0 : index
    %0 = vector.load %arg1[%c0, %c0_0] : memref<16x4xi32, #tpu.memory_space<vmem>>, vector<16x4xi32>
    %1 = tpu.iota {dimensions = array<i32: 1>} : vector<16x256xi32>
    %2 = vector.extract_strided_slice %0 {offsets = [0, 0], sizes = [16, 1], strides = [1, 1]} : vector<16x4xi32> to vector<16x1xi32>
    %3 = vector.broadcast %2 : vector<16x1xi32> to vector<16x256xi32>
    %4 = arith.cmpi eq, %3, %1 : vector<16x256xi32>
    %5 = arith.extui %4 : vector<16x256xi1> to vector<16x256xi32>
    %6 = arith.sitofp %5 : vector<16x256xi32> to vector<16x256xf32>
    %7 = vector.extract_strided_slice %0 {offsets = [0, 1], sizes = [16, 1], strides = [1, 1]} : vector<16x4xi32> to vector<16x1xi32>
    %8 = vector.broadcast %7 : vector<16x1xi32> to vector<16x256xi32>
    %9 = arith.cmpi eq, %8, %1 : vector<16x256xi32>
    %10 = arith.extui %9 : vector<16x256xi1> to vector<16x256xi32>
    %11 = arith.sitofp %10 : vector<16x256xi32> to vector<16x256xf32>
    %12 = arith.addf %6, %11 : vector<16x256xf32>
    %13 = vector.extract_strided_slice %0 {offsets = [0, 2], sizes = [16, 1], strides = [1, 1]} : vector<16x4xi32> to vector<16x1xi32>
    %14 = vector.broadcast %13 : vector<16x1xi32> to vector<16x256xi32>
    %15 = arith.cmpi eq, %14, %1 : vector<16x256xi32>
    %16 = arith.extui %15 : vector<16x256xi1> to vector<16x256xi32>
    %17 = arith.sitofp %16 : vector<16x256xi32> to vector<16x256xf32>
    %18 = arith.addf %12, %17 : vector<16x256xf32>
    %19 = vector.extract_strided_slice %0 {offsets = [0, 3], sizes = [16, 1], strides = [1, 1]} : vector<16x4xi32> to vector<16x1xi32>
    %20 = vector.broadcast %19 : vector<16x1xi32> to vector<16x256xi32>
    %21 = arith.cmpi eq, %20, %1 : vector<16x256xi32>
    %22 = arith.extui %21 : vector<16x256xi1> to vector<16x256xi32>
    %23 = arith.sitofp %22 : vector<16x256xi32> to vector<16x256xf32>
    %24 = arith.addf %18, %23 : vector<16x256xf32>
    %c0_1 = arith.constant 0 : index
    %c0_2 = arith.constant 0 : index
    %25 = vector.load %arg2[%c0_1, %c0_2] : memref<256x128xf32, #tpu.memory_space<vmem>>, vector<256x128xf32>
    %cst = arith.constant dense<0.000000e+00> : vector<16x128xf32>
    %26 = tpu.matmul %24, %25, %cst {dimension_numbers = #tpu.dot_dimension_numbers<[1], [0], [0], [1], [0, 0, 1, 1], [], []>} : vector<16x256xf32>, vector<256x128xf32>, vector<16x128xf32> -> vector<16x128xf32>
    %c0_3 = arith.constant 0 : index
    %c0_4 = arith.constant 0 : index
    %27 = vector.load %arg3[%c0_3, %c0_4] : memref<16x128xf32, #tpu.memory_space<vmem>>, vector<16x128xf32>
    tpu.vector_store %arg3[%c0_3, %c0_4], %26 {strides = array<i32>} : memref<16x128xf32, #tpu.memory_space<vmem>>, vector<16x128xf32>,
    return
  }
  func.func @transform_0(%arg0: i32) -> (i32, i32) {
    %c0_i32 = arith.constant 0 : i32
    %c0_i32_0 = arith.constant 0 : i32
    return %arg0, %c0_i32 : i32, i32
  }
  func.func @transform_1(%arg0: i32) -> (i32, i32) {
    %c0_i32 = arith.constant 0 : i32
    %c0_i32_0 = arith.constant 0 : i32
    %c0_i32_1 = arith.constant 0 : i32
    return %c0_i32, %c0_i32_0 : i32, i32
  }
  func.func @transform_2(%arg0: i32) -> (i32, i32) {
    %c0_i32 = arith.constant 0 : i32
    %c0_i32_0 = arith.constant 0 : i32
    return %arg0, %c0_i32 : i32, i32
  }
}

</mosaic_0001>

<llo_original>
// kernel: tpu_custom_call.1
$region0: #{tpu_custom_call.1}
  #allocation0 [shape = 'u32[]', space=smem, size = 0x4, offset = 0x4, fixed_abs, tag = 'smem constant byte address 0x4 - core index']
  #allocation1 [shape = 'u32[144,128]{1,0:T(1,128)}', space=vmem, size = 0x12000, scoped, tag = 'internal scratch']
  %s0 = inlined_call_operand.vmem [shape: s32[16,4], index: 0, kind: input, shape index: {}]
  %s1 = inlined_call_operand.hbm [shape: f32[256,128], index: 1, kind: input, shape index: {}]
  %s2 = inlined_call_operand.hbm [shape: f32[16,128], index: 2, kind: output, shape index: {}]
  %s3 = sld [smem:[#allocation0]]
  $region22: #{tpu_custom_call.1} parent=0
    _
  %s5 = ssub.s32 1, %s3
  %s6 = scalar_select 0, %s5, %s3
  $region1: #{tpu_custom_call.1} parent=0
    #allocation2 [shape = 'u8[131072]{0}', space=vmem, size = 0x20000, scoped, tag = 'input window, operand 1, single buffered']
    #allocation3 [shape = 's32[1]{0}', space=sflag, size = 0x4, scoped, tag = 'scoped memory for tpu_custom_call.1']
    #allocation4 [shape = 's32[1]{0}', space=sflag, size = 0x4, scoped, tag = 'scoped memory for tpu_custom_call.1']
    #allocation5 [shape = 'u8[8192]{0}', space=vmem, size = 0x2000, scoped, tag = 'output window, operand 0, single buffered']
    %7 = vsyncpa [#allocation3], 0
    %8 = vsyncpa [#allocation4], 0
    // Predicated region
    $region2: #{tpu_custom_call.1} parent=1 // pred_check
      _
    $region3: #{tpu_custom_call.1} parent=1 // pred_check_branch
      %10 = sbr.rel (0) target = $region5
    $region4: #{tpu_custom_call.1} parent=1 // pred_region
      _
    $region5: #{tpu_custom_call.1} parent=1 // pred_fallthru
      _
    // Predicated region
    $region6: #{tpu_custom_call.1} parent=1 // pred_check
      _
    $region7: #{tpu_custom_call.1} parent=1 // pred_check_branch
      %12 = sbr.rel (0) target = $region9
    $region8: #{tpu_custom_call.1} parent=1 // pred_region
      %s14 = ssub.s32 4096, 4096
      %15 = vsyncadd [#allocation3], %s14
      %s16 = sshll.u32 [#allocation2], 4
      %s17 = int_to_ptr.vmem [resolvable:$true] %s16
      %22 = dma.hbm_to_vmem [thread:$0]  %s1, 4096, %s17, [#allocation3], 128, 128, 8
    $region9: #{tpu_custom_call.1} parent=1 // pred_fallthru
      _
    // Predicated region
    $region10: #{tpu_custom_call.1} parent=1 // pred_check
      _
    $region11: #{tpu_custom_call.1} parent=1 // pred_check_branch
      %24 = sbr.rel (0) target = $region13
    $region12: #{tpu_custom_call.1} parent=1 // pred_region
      %25 = dma.done [#allocation3], 4096
    $region13: #{tpu_custom_call.1} parent=1 // pred_fallthru
      _
    %v26 = vld [vmem:[%s0] sm:$0xff]
    %v27 = vld [vmem:[%s0 + $0x8] sm:$0xff]
    %v28 = vlaneseq
    %v29 = vand.u32 %v28, 127
    %v30 = vadd.s32 %v29, 128
    %31 = vset.pattern.permute.xlu0 0
    %32 = vperm.xlu0 %31, %v26
    %v33 = vpop.permute.xlu0 %32
    %34 = vset.pattern.permute.xlu0 0
    %35 = vperm.xlu0 %34, %v27
    %v36 = vpop.permute.xlu0 %35
    %vm37 = vcmp.eq.s32.totalorder %v33, %v29
    %vm38 = vcmp.eq.s32.totalorder %v33, %v30
    %vm39 = vcmp.eq.s32.totalorder %v36, %v29
    %vm40 = vcmp.eq.s32.totalorder %v36, %v30
    %v41 = vsel %vm37, 1, 0
    %v42 = vsel %vm38, 1, 0
    %v43 = vsel %vm39, 1, 0
    %v44 = vsel %vm40, 1, 0
    %v45 = vcvt.s32.f32 %v41
    %v46 = vcvt.s32.f32 %v42
    %v47 = vcvt.s32.f32 %v43
    %v48 = vcvt.s32.f32 %v44
    %49 = vset.pattern.permute.xlu0 1
    %50 = vperm.xlu0 %49, %v26
    %v51 = vpop.permute.xlu0 %50
    %52 = vset.pattern.permute.xlu0 1
    %53 = vperm.xlu0 %52, %v27
    %v54 = vpop.permute.xlu0 %53
    %vm55 = vcmp.eq.s32.totalorder %v51, %v29
    %vm56 = vcmp.eq.s32.totalorder %v51, %v30
    %vm57 = vcmp.eq.s32.totalorder %v54, %v29
    %vm58 = vcmp.eq.s32.totalorder %v54, %v30
    %v59 = vsel %vm55, 1, 0
    %v60 = vsel %vm56, 1, 0
    %v61 = vsel %vm57, 1, 0
    %v62 = vsel %vm58, 1, 0
    %v63 = vcvt.s32.f32 %v59
    %v64 = vcvt.s32.f32 %v60
    %v65 = vcvt.s32.f32 %v61
    %v66 = vcvt.s32.f32 %v62
    %v67 = vadd.f32 %v45, %v63
    %v68 = vadd.f32 %v46, %v64
    %v69 = vadd.f32 %v47, %v65
    %v70 = vadd.f32 %v48, %v66
    %71 = vset.pattern.permute.xlu0 2
    %72 = vperm.xlu0 %71, %v26
    %v73 = vpop.permute.xlu0 %72
    %74 = vset.pattern.permute.xlu0 2
    %75 = vperm.xlu0 %74, %v27
    %v76 = vpop.permute.xlu0 %75
    %vm77 = vcmp.eq.s32.totalorder %v73, %v29
    %vm78 = vcmp.eq.s32.totalorder %v73, %v30
    %vm79 = vcmp.eq.s32.totalorder %v76, %v29
    %vm80 = vcmp.eq.s32.totalorder %v76, %v30
    %v81 = vsel %vm77, 1, 0
    %v82 = vsel %vm78, 1, 0
    %v83 = vsel %vm79, 1, 0
    %v84 = vsel %vm80, 1, 0
    %v85 = vcvt.s32.f32 %v81
    %v86 = vcvt.s32.f32 %v82
    %v87 = vcvt.s32.f32 %v83
    %v88 = vcvt.s32.f32 %v84
    %v89 = vadd.f32 %v67, %v85
    %v90 = vadd.f32 %v68, %v86
    %v91 = vadd.f32 %v69, %v87
    %v92 = vadd.f32 %v70, %v88
    %93 = vset.pattern.permute.xlu0 3
    %94 = vperm.xlu0 %93, %v26
    %v95 = vpop.permute.xlu0 %94
    %96 = vset.pattern.permute.xlu0 3
    %97 = vperm.xlu0 %96, %v27
    %v98 = vpop.permute.xlu0 %97
    %vm99 = vcmp.eq.s32.totalorder %v95, %v29
    %vm100 = vcmp.eq.s32.totalorder %v95, %v30
    %vm101 = vcmp.eq.s32.totalorder %v98, %v29
    %vm102 = vcmp.eq.s32.totalorder %v98, %v30
    %v103 = vsel %vm99, 1, 0
    %v104 = vsel %vm100, 1, 0
    %v105 = vsel %vm101, 1, 0
    %v106 = vsel %vm102, 1, 0
    %v107 = vcvt.s32.f32 %v103
    %v108 = vcvt.s32.f32 %v104
    %v109 = vcvt.s32.f32 %v105
    %v110 = vcvt.s32.f32 %v106
    %v111 = vadd.f32 %v89, %v107
    %v112 = vadd.f32 %v90, %v108
    %v113 = vadd.f32 %v91, %v109
    %v114 = vadd.f32 %v92, %v110
    %v115 = vld [vmem:[#allocation2] sm:$0xff]
    %v116 = vld [vmem:[#allocation2 + $0x8] sm:$0xff]
    %v117 = vld [vmem:[#allocation2 + $0x10] sm:$0xff]
    %v118 = vld [vmem:[#allocation2 + $0x18] sm:$0xff]
    %v119 = vld [vmem:[#allocation2 + $0x20] sm:$0xff]
    %v120 = vld [vmem:[#allocation2 + $0x28] sm:$0xff]
    %v121 = vld [vmem:[#allocation2 + $0x30] sm:$0xff]
    %v122 = vld [vmem:[#allocation2 + $0x38] sm:$0xff]
    %v123 = vld [vmem:[#allocation2 + $0x40] sm:$0xff]
    %v124 = vld [vmem:[#allocation2 + $0x48] sm:$0xff]
    %v125 = vld [vmem:[#allocation2 + $0x50] sm:$0xff]
    %v126 = vld [vmem:[#allocation2 + $0x58] sm:$0xff]
    %v127 = vld [vmem:[#allocation2 + $0x60] sm:$0xff]
    %v128 = vld [vmem:[#allocation2 + $0x68] sm:$0xff]
    %v129 = vld [vmem:[#allocation2 + $0x70] sm:$0xff]
    %v130 = vld [vmem:[#allocation2 + $0x78] sm:$0xff]
    %v131 = vld [vmem:[#allocation2 + $0x80] sm:$0xff]
    %v132 = vld [vmem:[#allocation2 + $0x88] sm:$0xff]
    %v133 = vld [vmem:[#allocation2 + $0x90] sm:$0xff]
    %v134 = vld [vmem:[#allocation2 + $0x98] sm:$0xff]
    %v135 = vld [vmem:[#allocation2 + $0xa0] sm:$0xff]
    %v136 = vld [vmem:[#allocation2 + $0xa8] sm:$0xff]
    %v137 = vld [vmem:[#allocation2 + $0xb0] sm:$0xff]
    %v138 = vld [vmem:[#allocation2 + $0xb8] sm:$0xff]
    %v139 = vld [vmem:[#allocation2 + $0xc0] sm:$0xff]
    %v140 = vld [vmem:[#allocation2 + $0xc8] sm:$0xff]
    %v141 = vld [vmem:[#allocation2 + $0xd0] sm:$0xff]
    %v142 = vld [vmem:[#allocation2 + $0xd8] sm:$0xff]
    %v143 = vld [vmem:[#allocation2 + $0xe0] sm:$0xff]
    %v144 = vld [vmem:[#allocation2 + $0xe8] sm:$0xff]
    %v145 = vld [vmem:[#allocation2 + $0xf0] sm:$0xff]
    %v146 = vld [vmem:[#allocation2 + $0xf8] sm:$0xff]
    %147 = vmatprep.subr.mxu0 0.0
    %148 = vmatpush1.msra.mxu0 %v130
    %149 = vmatprep.subr.mxu0 0.0
    %150 = vmatpush1.msra.mxu0 %v129
    %151 = vmatprep.subr.mxu0 0.0
    %152 = vmatpush1.msra.mxu0 %v128
    %153 = vmatprep.subr.mxu0 0.0
    %154 = vmatpush1.msra.mxu0 %v127
    %155 = vmatprep.subr.mxu0 0.0
    %156 = vmatpush1.msra.mxu0 %v126
    %157 = vmatprep.subr.mxu0 0.0
    %158 = vmatpush1.msra.mxu0 %v125
    %159 = vmatprep.subr.mxu0 0.0
    %160 = vmatpush1.msra.mxu0 %v124
    %161 = vmatprep.subr.mxu0 0.0
    %162 = vmatpush1.msra.mxu0 %v123
    %163 = vmatprep.subr.mxu0 0.0
    %164 = vmatpush1.msra.mxu0 %v122
    %165 = vmatprep.subr.mxu0 0.0
    %166 = vmatpush1.msra.mxu0 %v121
    %167 = vmatprep.subr.mxu0 0.0
    %168 = vmatpush1.msra.mxu0 %v120
    %169 = vmatprep.subr.mxu0 0.0
    %170 = vmatpush1.msra.mxu0 %v119
    %171 = vmatprep.subr.mxu0 0.0
    %172 = vmatpush1.msra.mxu0 %v118
    %173 = vmatprep.subr.mxu0 0.0
    %174 = vmatpush1.msra.mxu0 %v117
    %175 = vmatprep.subr.mxu0 0.0
    %176 = vmatpush1.msra.mxu0 %v116
    %177 = vmatprep.subr.mxu0 0.0
    %178 = vmatpush1.msra.mxu0 %v115
    %179 = vmatprep.subr.mxu0 0.0
    %180 = vmatpush2.msra.mxu0 %v146
    %181 = vmatprep.subr.mxu0 0.0
    %182 = vmatpush2.msra.mxu0 %v145
    %183 = vmatprep.subr.mxu0 0.0
    %184 = vmatpush2.msra.mxu0 %v144
    %185 = vmatprep.subr.mxu0 0.0
    %186 = vmatpush2.msra.mxu0 %v143
    %187 = vmatprep.subr.mxu0 0.0
    %188 = vmatpush2.msra.mxu0 %v142
    %189 = vmatprep.subr.mxu0 0.0
    %190 = vmatpush2.msra.mxu0 %v141
    %191 = vmatprep.subr.mxu0 0.0
    %192 = vmatpush2.msra.mxu0 %v140
    %193 = vmatprep.subr.mxu0 0.0
    %194 = vmatpush2.msra.mxu0 %v139
    %195 = vmatprep.subr.mxu0 0.0
    %196 = vmatpush2.msra.mxu0 %v138
    %197 = vmatprep.subr.mxu0 0.0
    %198 = vmatpush2.msra.mxu0 %v137
    %199 = vmatprep.subr.mxu0 0.0
    %200 = vmatpush2.msra.mxu0 %v136
    %201 = vmatprep.subr.mxu0 0.0
    %202 = vmatpush2.msra.mxu0 %v135
    %203 = vmatprep.subr.mxu0 0.0
    %204 = vmatpush2.msra.mxu0 %v134
    %205 = vmatprep.subr.mxu0 0.0
    %206 = vmatpush2.msra.mxu0 %v133
    %207 = vmatprep.subr.mxu0 0.0
    %208 = vmatpush2.msra.mxu0 %v132
    %209 = vmatprep.subr.mxu0 0.0
    %210 = vmatpush2.msra.mxu0 %v131
    %211 = vmatprep.mubr.f32.mxu0 %v112
    %212 = vmatmul.mubr.f32.gmra.mxu0 %v111
    %v213 = vpop.f32.mrf.mxu0
    %v214 = vadd.f32 0.0, %v213
    %v215 = vpop.f32.mrf.mxu0
    %216 = vmatprep.mubr.f32.mxu0 %v114
    %217 = vmatmul.mubr.f32.gmra.mxu0 %v113
    %v218 = vpop.f32.mrf.mxu0
    %v219 = vadd.f32 0.0, %v218
    %v220 = vpop.f32.mrf.mxu0
    %221 = vdwg.mxu0
    %222 = vst [vmem:[#allocation5] sm:$0xff] %v214
    %223 = vst [vmem:[#allocation5 + $0x8] sm:$0xff] %v219
    // Predicated region
    $region14: #{tpu_custom_call.1} parent=1 // pred_check
      _
    $region15: #{tpu_custom_call.1} parent=1 // pred_check_branch
      %225 = sbr.rel (0) target = $region17
    $region16: #{tpu_custom_call.1} parent=1 // pred_region
      %s227 = ssub.s32 256, 256
      %228 = vsyncadd [#allocation4], %s227
      %s229 = sshll.u32 [#allocation5], 4
      %s230 = int_to_ptr.vmem [resolvable:$true] %s229
      %235 = dma.vmem_to_hbm [thread:$0]  %s230, 256, %s2, [#allocation4], 128, 128, 8
    $region17: #{tpu_custom_call.1} parent=1 // pred_fallthru
      _
    // Predicated region
    $region18: #{tpu_custom_call.1} parent=1 // pred_check
      _
    $region19: #{tpu_custom_call.1} parent=1 // pred_check_branch
      %237 = sbr.rel (0) target = $region21
    $region20: #{tpu_custom_call.1} parent=1 // pred_region
      %238 = dma.done [#allocation4], 256
    $region21: #{tpu_custom_call.1} parent=1 // pred_fallthru
      _
    %239 = vsyncpa [#allocation3], 1
    %240 = vsyncpa [#allocation4], 1

</llo_original>
